<compile_context>
chip_gen: v5e
topology: v5e:2x2
jax: 0.10.0
libtpu: 0.0.40
codegen_flags: <defaults>
</compile_context>

<pallas_src>
import functools

import numpy as np
import jax
import jax.numpy as jnp
from jax.experimental import pallas as pl
from jax.experimental.pallas import tpu as pltpu


def _round_up(x, m):
    return ((x + m - 1) // m) * m


def _build_selection(bond_idx, angle_idx, num_atoms, bp, ap):
    """±1 selection matrix  [3*num_atoms, 3*bp + 6*ap]  (f32, constant).

    Columns:  [dx(bp) | dy | dz | v1x(ap) | v1y | v1z | v2x | v2y | v2z]
    so that   coords_flat[n, :] @ S  produces every bond / angle difference.
    """
    bond_idx = np.asarray(bond_idx, dtype=np.int64)
    angle_idx = np.asarray(angle_idx, dtype=np.int64)
    nb, na = bond_idx.shape[0], angle_idx.shape[0]
    S = np.zeros((3 * num_atoms, 3 * bp + 6 * ap), np.float32)
    b0, b1 = bond_idx[:, 0], bond_idx[:, 1]
    a0, a1, a2 = angle_idx[:, 0], angle_idx[:, 1], angle_idx[:, 2]
    pb, pa = np.arange(nb), np.arange(na)
    for c in range(3):
        # d  = atom1 - atom2
        S[3 * b0 + c, c * bp + pb] += 1.0
        S[3 * b1 + c, c * bp + pb] -= 1.0
        # v1 = atom1 - atom2
        S[3 * a0 + c, 3 * bp + c * ap + pa] += 1.0
        S[3 * a1 + c, 3 * bp + c * ap + pa] -= 1.0
        # v2 = atom3 - atom2
        S[3 * a2 + c, 3 * bp + 3 * ap + c * ap + pa] += 1.0
        S[3 * a1 + c, 3 * bp + 3 * ap + c * ap + pa] -= 1.0
    return S


def _physics_kernel(coords_ref, s_ref, out_ref, acc_ref, *,
                    bp, ap, num_bonds, num_angles):
    i = pl.program_id(1)

    @pl.when(i == 0)
    def _init():
        acc_ref[0] = jnp.float32(0.0)
        acc_ref[1] = jnp.float32(0.0)

    # Compile-time constant scalings (no runtime divides).  Unbiased variance
    # is deliberately NaN for a single bond/angle (matches torch.var ddof=1).
    inv_nb = jnp.float32(1.0 / num_bonds)
    inv_nbm1 = jnp.float32(1.0 / (num_bonds - 1)) if num_bonds > 1 else jnp.float32(jnp.nan)
    inv_na = jnp.float32(1.0 / num_angles)
    inv_nam1 = jnp.float32(1.0 / (num_angles - 1)) if num_angles > 1 else jnp.float32(jnp.nan)

    # --- fused gather + difference on the MXU (one ±1-selection matmul) -----
    # coords_ref: [tile_n, 3*num_atoms]   s_ref: [3*num_atoms, 3*bp + 6*ap]
    diff = jnp.dot(coords_ref[...], s_ref[...],
                   preferred_element_type=jnp.float32)    # [tile_n, 3*bp+6*ap]

    # ---------------- Bond-length constraint energy ----------------
    dx = diff[:, 0 * bp:1 * bp]
    dy = diff[:, 1 * bp:2 * bp]
    dz = diff[:, 2 * bp:3 * bp]
    lengths = jnp.sqrt(dx * dx + dy * dy + dz * dz)       # padded lanes -> 0

    mean_l = jnp.sum(lengths, axis=1, keepdims=True) * inv_nb
    dev_l = lengths - mean_l
    if bp != num_bonds:
        bmask = jax.lax.broadcasted_iota(jnp.int32, (1, bp), 1) < num_bonds
        dev_l = jnp.where(bmask, dev_l, 0.0)
    bond_partial = jnp.sum(dev_l * dev_l) * inv_nbm1      # sum of per-frame vars

    # ---------------- Angle constraint energy ----------------
    o = 3 * bp
    a1x = diff[:, o + 0 * ap:o + 1 * ap]
    a1y = diff[:, o + 1 * ap:o + 2 * ap]
    a1z = diff[:, o + 2 * ap:o + 3 * ap]
    a2x = diff[:, o + 3 * ap:o + 4 * ap]
    a2y = diff[:, o + 4 * ap:o + 5 * ap]
    a2z = diff[:, o + 5 * ap:o + 6 * ap]

    s1 = a1x * a1x + a1y * a1y + a1z * a1z
    s2 = a2x * a2x + a2y * a2y + a2z * a2z
    dot = a1x * a2x + a1y * a2y + a1z * a2z

    # Single merged rsqrt (EUP); 1e-24 floor on the product keeps zero-padded
    # lanes/frames finite (cos == 0 exactly there).
    cos = dot * jax.lax.rsqrt(jnp.maximum(s1 * s2, jnp.float32(1e-24)))
    cos = jnp.clip(cos, -1.0, 1.0)

    mean_c = jnp.sum(cos, axis=1, keepdims=True) * inv_na
    dev_c = cos - mean_c
    if ap != num_angles:
        amask = jax.lax.broadcasted_iota(jnp.int32, (1, ap), 1) < num_angles
        dev_c = jnp.where(amask, dev_c, 0.0)
    angle_partial = jnp.sum(dev_c * dev_c) * inv_nam1

    acc_ref[0] = acc_ref[0] + bond_partial
    acc_ref[1] = acc_ref[1] + angle_partial

    @pl.when(i == pl.num_programs(1) - 1)
    def _finalize():
        r = jax.lax.broadcasted_iota(jnp.int32, (8, 128), 0)
        c = jax.lax.broadcasted_iota(jnp.int32, (8, 128), 1)
        vals = jnp.where((r == 0) & (c == 0), acc_ref[0],
                         jnp.where((r == 0) & (c == 1), acc_ref[1],
                                   jnp.float32(0.0)))
        out_ref[...] = vals


def physics_constraints(coords, bond_indices, angle_indices):
    """JAX/Pallas equivalent of PhysicsConstraints.forward (both index sets given)."""
    B, T, C = coords.shape
    N = B * T
    num_atoms = C // 3

    nb = int(bond_indices.shape[0])
    na = int(angle_indices.shape[0])
    BP = _round_up(max(nb, 1), 128)        # VMEM-only padding (128-aligned sections)
    AP = _round_up(max(na, 1), 128)
    total_cols = 3 * BP + 6 * AP

    # Constant ±1 selection matrix (gather+difference fused as one matmul).
    s_mat = jnp.asarray(_build_selection(bond_indices, angle_indices, num_atoms, BP, AP))

    # ---- frame-axis tiling --------------------------------------------------
    coords_bytes = 4 * 3 * num_atoms                       # dense coords row
    diff_bytes = 4 * total_cols                            # matmul result row
    per_frame = 2 * coords_bytes + 4 * diff_bytes          # dbl-buffer in + intermediates
    s_bytes = 4 * 3 * num_atoms * total_cols
    budget = 20 * 1024 * 1024                              # safe within v7x 32 MiB scoped VMEM
    rows_cap = max(8, ((budget - s_bytes) // max(per_frame, 1)) // 8 * 8)
    tile_cap = int(min(512, rows_cap))

    total_blocks = max(1, pl.cdiv(N, tile_cap))
    n_split = 2 if total_blocks >= 2 else 1                # 2-TC partial sums on v7x
    total_blocks = _round_up(total_blocks, n_split)
    grid_inner = total_blocks // n_split
    tile_n = _round_up(pl.cdiv(N, total_blocks), 8)        # bounded frame padding (<8/block)
    n_pad = total_blocks * tile_n

    cflat = coords.reshape(N, 3 * num_atoms).astype(jnp.float32)   # free reshape, dense HBM
    if n_pad != N:
        cflat = jnp.pad(cflat, ((0, n_pad - N), (0, 0)))   # zero frames contribute exactly 0

    kernel = functools.partial(
        _physics_kernel, bp=BP, ap=AP, num_bonds=nb, num_angles=na,
    )

    out = pl.pallas_call(
        kernel,
        out_shape=jax.ShapeDtypeStruct((n_split * 8, 128), jnp.float32),
        grid_spec=pltpu.PrefetchScalarGridSpec(
            num_scalar_prefetch=0,
            grid=(n_split, grid_inner),
            in_specs=[
                pl.BlockSpec((tile_n, 3 * num_atoms),
                             lambda c, i: (c * grid_inner + i, 0)),
                pl.BlockSpec((3 * num_atoms, total_cols),   # constant block: DMA'd once
                             lambda c, i: (0, 0)),
            ],
            out_specs=pl.BlockSpec((8, 128), lambda c, i: (c, 0)),
            scratch_shapes=[pltpu.SMEM((2,), jnp.float32)],
        ),
        compiler_params=pltpu.CompilerParams(
            dimension_semantics=("parallel", "arbitrary"),
            vmem_limit_bytes=32 * 1024 * 1024,
        ),
    )(cflat, s_mat)

    partials = out[0::8, :2]                                # (n_split, 2)
    return jnp.sum(partials) * jnp.float32(1.0 / N)


def _reference(coords, bond_indices, angle_indices):
    """Pure-JAX reference mirroring the PyTorch semantics."""
    B, T, C = coords.shape
    cf = coords.reshape(B * T, C // 3, 3).astype(jnp.float32)

    a1 = cf[:, bond_indices[:, 0], :]
    a2 = cf[:, bond_indices[:, 1], :]
    bl = jnp.linalg.norm(a1 - a2, axis=2)
    bond_energy = jnp.mean(jnp.var(bl, axis=1, ddof=1))

    p1 = cf[:, angle_indices[:, 0], :]
    p2 = cf[:, angle_indices[:, 1], :]
    p3 = cf[:, angle_indices[:, 2], :]
    v1 = p1 - p2
    v2 = p3 - p2
    eps = 1e-12
    v1n = v1 / jnp.maximum(jnp.linalg.norm(v1, axis=2, keepdims=True), eps)
    v2n = v2 / jnp.maximum(jnp.linalg.norm(v2, axis=2, keepdims=True), eps)
    cos = jnp.clip(jnp.sum(v1n * v2n, axis=2), -1.0, 1.0)
    angle_energy = jnp.mean(jnp.var(cos, axis=1, ddof=1))

    return bond_energy + angle_energy


if __name__ == "__main__":
    key = jax.random.PRNGKey(0)

    # Small shapes consistent with the module: batch=2, time_steps=8,
    # num_atoms=8 -> coord_dim=24.
    batch_size, time_steps, num_atoms = 2, 8, 8
    coord_dim = 3 * num_atoms

    coords = jax.random.normal(key, (batch_size, time_steps, coord_dim), dtype=jnp.float32)

    # Deterministic chain bonds / angles over the atoms.
    bond_indices = jnp.array([[i, i + 1] for i in range(num_atoms - 1)], dtype=jnp.int32)
    angle_indices = jnp.array([[i, i + 1, i + 2] for i in range(num_atoms - 2)], dtype=jnp.int32)

    energy = physics_constraints(coords, bond_indices, angle_indices)
    energy = jax.block_until_ready(energy)

    ref_energy = _reference(coords, bond_indices, angle_indices)
    assert jnp.allclose(energy, ref_energy, rtol=1e-5, atol=1e-5), (energy, ref_energy)

    print("KERNEL_OK")
</pallas_src>

<mosaic_0001>
module attributes {stable_mosaic.version = 11 : i64} {
  func.func @_physics_kernel(%arg0: i32, %arg1: i32, %arg2: memref<16x24xf32, #tpu.memory_space<vmem>>, %arg3: memref<24x1152xf32, #tpu.memory_space<vmem>>, %arg4: memref<8x128xf32, #tpu.memory_space<vmem>>, %arg5: memref<2xf32, #tpu.memory_space<smem>>) attributes {dimension_semantics = [#tpu.dimension_semantics<parallel>, #tpu.dimension_semantics<arbitrary>], iteration_bounds = array<i64: 1, 1>, scalar_prefetch = 0 : i64, scratch_operands = 1 : i64, tpu.core_type = #tpu.core_type<tc>, window_params = [{transform_indices = @transform_0, window_bounds = array<i64: 16, 24>}, {pipeline_mode = #tpu.pipeline_mode<synchronous>, transform_indices = @transform_1, window_bounds = array<i64: 24, 1152>}, {transform_indices = @transform_2, window_bounds = array<i64: 8, 128>}]} {
    %c0_i32 = arith.constant 0 : i32
    %0 = arith.cmpi eq, %arg1, %c0_i32 : i32
    %1 = arith.extui %0 : i1 to i32
    %c0_i32_0 = arith.constant 0 : i32
    %2 = arith.cmpi ne, %1, %c0_i32_0 : i32
    scf.if %2 {
      %cst_22 = arith.constant 0.000000e+00 : f32
      %c0_23 = arith.constant 0 : index
      %92 = memref.load %arg5[%c0_23] : memref<2xf32, #tpu.memory_space<smem>>
      memref.store %cst_22, %arg5[%c0_23] : memref<2xf32, #tpu.memory_space<smem>>
      %cst_24 = arith.constant 0.000000e+00 : f32
      %c1_25 = arith.constant 1 : index
      %93 = memref.load %arg5[%c1_25] : memref<2xf32, #tpu.memory_space<smem>>
      memref.store %cst_24, %arg5[%c1_25] : memref<2xf32, #tpu.memory_space<smem>>
    } else {
    }
    %c0 = arith.constant 0 : index
    %c0_1 = arith.constant 0 : index
    %3 = vector.load %arg2[%c0, %c0_1] : memref<16x24xf32, #tpu.memory_space<vmem>>, vector<16x24xf32>
    %c0_2 = arith.constant 0 : index
    %c0_3 = arith.constant 0 : index
    %4 = vector.load %arg3[%c0_2, %c0_3] : memref<24x1152xf32, #tpu.memory_space<vmem>>, vector<24x1152xf32>
    %cst = arith.constant dense<0.000000e+00> : vector<16x1152xf32>
    %5 = tpu.matmul %3, %4, %cst {dimension_numbers = #tpu.dot_dimension_numbers<[1], [0], [0], [1], [0, 0, 1, 1], [], []>} : vector<16x24xf32>, vector<24x1152xf32>, vector<16x1152xf32> -> vector<16x1152xf32>
    %6 = vector.extract_strided_slice %5 {offsets = [0, 0], sizes = [16, 128], strides = [1, 1]} : vector<16x1152xf32> to vector<16x128xf32>
    %7 = vector.extract_strided_slice %5 {offsets = [0, 128], sizes = [16, 128], strides = [1, 1]} : vector<16x1152xf32> to vector<16x128xf32>
    %8 = vector.extract_strided_slice %5 {offsets = [0, 256], sizes = [16, 128], strides = [1, 1]} : vector<16x1152xf32> to vector<16x128xf32>
    %9 = arith.mulf %6, %6 : vector<16x128xf32>
    %10 = arith.mulf %7, %7 : vector<16x128xf32>
    %11 = arith.addf %9, %10 : vector<16x128xf32>
    %12 = arith.mulf %8, %8 : vector<16x128xf32>
    %13 = arith.addf %11, %12 : vector<16x128xf32>
    %14 = math.sqrt %13 : vector<16x128xf32>
    %cst_4 = arith.constant dense<0.000000e+00> : vector<16xf32>
    %15 = vector.multi_reduction <add>, %14, %cst_4 [1] : vector<16x128xf32> to vector<16xf32>
    %16 = vector.shape_cast %15 : vector<16xf32> to vector<16x1xf32>
    %cst_5 = arith.constant 0.142857149 : f32
    %17 = vector.broadcast %cst_5 : f32 to vector<16x1xf32>
    %18 = arith.mulf %16, %17 : vector<16x1xf32>
    %19 = vector.broadcast %18 : vector<16x1xf32> to vector<16x128xf32>
    %20 = arith.subf %14, %19 : vector<16x128xf32>
    %21 = tpu.iota {dimensions = array<i32: 1>} : vector<1x128xi32>
    %c7_i32 = arith.constant 7 : i32
    %22 = vector.broadcast %c7_i32 : i32 to vector<1x128xi32>
    %23 = arith.cmpi slt, %21, %22 : vector<1x128xi32>
    %cst_6 = arith.constant 0.000000e+00 : f32
    %24 = vector.shape_cast %23 : vector<1x128xi1> to vector<1x128xi1>
    %25 = vector.broadcast %24 : vector<1x128xi1> to vector<16x128xi1>
    %26 = vector.broadcast %cst_6 : f32 to vector<16x128xf32>
    %27 = arith.select %25, %20, %26 : vector<16x128xi1>, vector<16x128xf32>
    %28 = arith.mulf %27, %27 : vector<16x128xf32>
    %29 = vector.shape_cast %28 : vector<16x128xf32> to vector<1x16x128xf32>
    %cst_7 = arith.constant dense<0.000000e+00> : vector<1xf32>
    %30 = vector.multi_reduction <add>, %29, %cst_7 [1, 2] : vector<1x16x128xf32> to vector<1xf32>
    %31 = vector.shape_cast %30 : vector<1xf32> to vector<1x1x1xf32>
    %32 = vector.extract %31[0, 0, 0] : f32 from vector<1x1x1xf32>
    %cst_8 = arith.constant 0.166666672 : f32
    %33 = arith.mulf %32, %cst_8 : f32
    %34 = vector.extract_strided_slice %5 {offsets = [0, 384], sizes = [16, 128], strides = [1, 1]} : vector<16x1152xf32> to vector<16x128xf32>
    %35 = vector.extract_strided_slice %5 {offsets = [0, 512], sizes = [16, 128], strides = [1, 1]} : vector<16x1152xf32> to vector<16x128xf32>
    %36 = vector.extract_strided_slice %5 {offsets = [0, 640], sizes = [16, 128], strides = [1, 1]} : vector<16x1152xf32> to vector<16x128xf32>
    %37 = vector.extract_strided_slice %5 {offsets = [0, 768], sizes = [16, 128], strides = [1, 1]} : vector<16x1152xf32> to vector<16x128xf32>
    %38 = vector.extract_strided_slice %5 {offsets = [0, 896], sizes = [16, 128], strides = [1, 1]} : vector<16x1152xf32> to vector<16x128xf32>
    %39 = vector.extract_strided_slice %5 {offsets = [0, 1024], sizes = [16, 128], strides = [1, 1]} : vector<16x1152xf32> to vector<16x128xf32>
    %40 = arith.mulf %34, %34 : vector<16x128xf32>
    %41 = arith.mulf %35, %35 : vector<16x128xf32>
    %42 = arith.addf %40, %41 : vector<16x128xf32>
    %43 = arith.mulf %36, %36 : vector<16x128xf32>
    %44 = arith.addf %42, %43 : vector<16x128xf32>
    %45 = arith.mulf %37, %37 : vector<16x128xf32>
    %46 = arith.mulf %38, %38 : vector<16x128xf32>
    %47 = arith.addf %45, %46 : vector<16x128xf32>
    %48 = arith.mulf %39, %39 : vector<16x128xf32>
    %49 = arith.addf %47, %48 : vector<16x128xf32>
    %50 = arith.mulf %34, %37 : vector<16x128xf32>
    %51 = arith.mulf %35, %38 : vector<16x128xf32>
    %52 = arith.addf %50, %51 : vector<16x128xf32>
    %53 = arith.mulf %36, %39 : vector<16x128xf32>
    %54 = arith.addf %52, %53 : vector<16x128xf32>
    %55 = arith.mulf %44, %49 : vector<16x128xf32>
    %cst_9 = arith.constant 1.000000e-24 : f32
    %56 = vector.broadcast %cst_9 : f32 to vector<16x128xf32>
    %57 = arith.maximumf %55, %56 : vector<16x128xf32>
    %58 = math.rsqrt %57 : vector<16x128xf32>
    %59 = arith.mulf %54, %58 : vector<16x128xf32>
    %cst_10 = arith.constant -1.000000e+00 : f32
    %cst_11 = arith.constant 1.000000e+00 : f32
    %60 = vector.broadcast %cst_10 : f32 to vector<16x128xf32>
    %61 = arith.maximumf %60, %59 : vector<16x128xf32>
    %62 = vector.broadcast %cst_11 : f32 to vector<16x128xf32>
    %63 = arith.minimumf %62, %61 : vector<16x128xf32>
    %cst_12 = arith.constant dense<0.000000e+00> : vector<16xf32>
    %64 = vector.multi_reduction <add>, %63, %cst_12 [1] : vector<16x128xf32> to vector<16xf32>
    %65 = vector.shape_cast %64 : vector<16xf32> to vector<16x1xf32>
    %cst_13 = arith.constant 0.166666672 : f32
    %66 = vector.broadcast %cst_13 : f32 to vector<16x1xf32>
    %67 = arith.mulf %65, %66 : vector<16x1xf32>
    %68 = vector.broadcast %67 : vector<16x1xf32> to vector<16x128xf32>
    %69 = arith.subf %63, %68 : vector<16x128xf32>
    %70 = tpu.iota {dimensions = array<i32: 1>} : vector<1x128xi32>
    %c6_i32 = arith.constant 6 : i32
    %71 = vector.broadcast %c6_i32 : i32 to vector<1x128xi32>
    %72 = arith.cmpi slt, %70, %71 : vector<1x128xi32>
    %cst_14 = arith.constant 0.000000e+00 : f32
    %73 = vector.shape_cast %72 : vector<1x128xi1> to vector<1x128xi1>
    %74 = vector.broadcast %73 : vector<1x128xi1> to vector<16x128xi1>
    %75 = vector.broadcast %cst_14 : f32 to vector<16x128xf32>
    %76 = arith.select %74, %69, %75 : vector<16x128xi1>, vector<16x128xf32>
    %77 = arith.mulf %76, %76 : vector<16x128xf32>
    %78 = vector.shape_cast %77 : vector<16x128xf32> to vector<1x16x128xf32>
    %cst_15 = arith.constant dense<0.000000e+00> : vector<1xf32>
    %79 = vector.multi_reduction <add>, %78, %cst_15 [1, 2] : vector<1x16x128xf32> to vector<1xf32>
    %80 = vector.shape_cast %79 : vector<1xf32> to vector<1x1x1xf32>
    %81 = vector.extract %80[0, 0, 0] : f32 from vector<1x1x1xf32>
    %cst_16 = arith.constant 2.000000e-01 : f32
    %82 = arith.mulf %81, %cst_16 : f32
    %c0_17 = arith.constant 0 : index
    %83 = memref.load %arg5[%c0_17] : memref<2xf32, #tpu.memory_space<smem>>
    %84 = arith.addf %83, %33 : f32
    %c0_18 = arith.constant 0 : index
    %85 = memref.load %arg5[%c0_18] : memref<2xf32, #tpu.memory_space<smem>>
    memref.store %84, %arg5[%c0_18] : memref<2xf32, #tpu.memory_space<smem>>
    %c1 = arith.constant 1 : index
    %86 = memref.load %arg5[%c1] : memref<2xf32, #tpu.memory_space<smem>>
    %87 = arith.addf %86, %82 : f32
    %c1_19 = arith.constant 1 : index
    %88 = memref.load %arg5[%c1_19] : memref<2xf32, #tpu.memory_space<smem>>
    memref.store %87, %arg5[%c1_19] : memref<2xf32, #tpu.memory_space<smem>>
    %c0_i32_20 = arith.constant 0 : i32
    %89 = arith.cmpi eq, %arg1, %c0_i32_20 : i32
    %90 = arith.extui %89 : i1 to i32
    %c0_i32_21 = arith.constant 0 : i32
    %91 = arith.cmpi ne, %90, %c0_i32_21 : i32
    scf.if %91 {
      %92 = tpu.iota {dimensions = array<i32: 0>} : vector<8x128xi32>
      %93 = tpu.iota {dimensions = array<i32: 1>} : vector<8x128xi32>
      %c0_i32_22 = arith.constant 0 : i32
      %94 = vector.broadcast %c0_i32_22 : i32 to vector<8x128xi32>
      %95 = arith.cmpi eq, %92, %94 : vector<8x128xi32>
      %c0_i32_23 = arith.constant 0 : i32
      %96 = vector.broadcast %c0_i32_23 : i32 to vector<8x128xi32>
      %97 = arith.cmpi eq, %93, %96 : vector<8x128xi32>
      %98 = arith.andi %95, %97 : vector<8x128xi1>
      %c0_24 = arith.constant 0 : index
      %99 = memref.load %arg5[%c0_24] : memref<2xf32, #tpu.memory_space<smem>>
      %c0_i32_25 = arith.constant 0 : i32
      %100 = vector.broadcast %c0_i32_25 : i32 to vector<8x128xi32>
      %101 = arith.cmpi eq, %92, %100 : vector<8x128xi32>
      %c1_i32 = arith.constant 1 : i32
      %102 = vector.broadcast %c1_i32 : i32 to vector<8x128xi32>
      %103 = arith.cmpi eq, %93, %102 : vector<8x128xi32>
      %104 = arith.andi %101, %103 : vector<8x128xi1>
      %c1_26 = arith.constant 1 : index
      %105 = memref.load %arg5[%c1_26] : memref<2xf32, #tpu.memory_space<smem>>
      %cst_27 = arith.constant 0.000000e+00 : f32
      %106 = vector.broadcast %105 : f32 to vector<8x128xf32>
      %107 = vector.broadcast %cst_27 : f32 to vector<8x128xf32>
      %108 = arith.select %104, %106, %107 : vector<8x128xi1>, vector<8x128xf32>
      %109 = vector.broadcast %99 : f32 to vector<8x128xf32>
      %110 = arith.select %98, %109, %108 : vector<8x128xi1>, vector<8x128xf32>
      %c0_28 = arith.constant 0 : index
      %c0_29 = arith.constant 0 : index
      %111 = vector.load %arg4[%c0_28, %c0_29] : memref<8x128xf32, #tpu.memory_space<vmem>>, vector<8x128xf32>
      tpu.vector_store %arg4[%c0_28, %c0_29], %110 {strides = array<i32>} : memref<8x128xf32, #tpu.memory_space<vmem>>, vector<8x128xf32>,
    } else {
    }
    return
  }
  func.func @transform_0(%arg0: i32, %arg1: i32) -> (i32, i32) {
    %c1_i32 = arith.constant 1 : i32
    %0 = arith.muli %arg0, %c1_i32 : i32
    %1 = arith.addi %0, %arg1 : i32
    %c0_i32 = arith.constant 0 : i32
    %c0_i32_0 = arith.constant 0 : i32
    return %1, %c0_i32 : i32, i32
  }
  func.func @transform_1(%arg0: i32, %arg1: i32) -> (i32, i32) {
    %c0_i32 = arith.constant 0 : i32
    %c0_i32_0 = arith.constant 0 : i32
    %c0_i32_1 = arith.constant 0 : i32
    return %c0_i32, %c0_i32_0 : i32, i32
  }
  func.func @transform_2(%arg0: i32, %arg1: i32) -> (i32, i32) {
    %c0_i32 = arith.constant 0 : i32
    %c0_i32_0 = arith.constant 0 : i32
    return %arg0, %c0_i32 : i32, i32
  }
}

</mosaic_0001>

<llo_original>
// kernel: tpu_custom_call.1
$region0: #{tpu_custom_call.1}
  #allocation0 [shape = 'u32[]', space=smem, size = 0x4, offset = 0x4, fixed_abs, tag = 'smem constant byte address 0x4 - core index']
  #allocation1 [shape = 'u32[72,128]{1,0:T(1,128)}', space=vmem, size = 0x9000, scoped, tag = 'internal scratch']
  #allocation2 [shape = 'f32[2]{0:T(128)}', space=smem, size = 0x200, scoped, tag = 'scratch operand']
  %s0 = inlined_call_operand.hbm [shape: f32[16,24], index: 0, kind: input, shape index: {}]
  %s1 = inlined_call_operand.hbm [shape: f32[24,1152], index: 1, kind: input, shape index: {}]
  %s2 = inlined_call_operand.hbm [shape: f32[8,128], index: 2, kind: output, shape index: {}]
  %s3 = sld [smem:[#allocation0]]
  $region34: #{tpu_custom_call.1} parent=0
    _
  %s5 = ssub.s32 1, %s3
  %s6 = scalar_select 0, %s5, %s3
  $region1: #{tpu_custom_call.1} parent=0
    #allocation3 [shape = 'u8[8192]{0}', space=vmem, size = 0x2000, scoped, tag = 'input window, operand 0, single buffered']
    #allocation4 [shape = 's32[1]{0}', space=sflag, size = 0x4, scoped, tag = 'scoped memory for tpu_custom_call.1']
    #allocation5 [shape = 's32[1]{0}', space=sflag, size = 0x4, scoped, tag = 'scoped memory for tpu_custom_call.1']
    #allocation6 [shape = 'u8[110592]{0}', space=vmem, size = 0x1b000, scoped, tag = 'input window, operand 1, single buffered']
    #allocation7 [shape = 's32[1]{0}', space=sflag, size = 0x4, scoped, tag = 'scoped memory for tpu_custom_call.1']
    #allocation8 [shape = 'u8[4096]{0}', space=vmem, size = 0x1000, scoped, tag = 'output window, operand 0, single buffered']
    %7 = vsyncpa [#allocation4], 0
    %8 = vsyncpa [#allocation7], 0
    %9 = vsyncpa [#allocation5], 0
    // Predicated region
    $region2: #{tpu_custom_call.1} parent=1 // pred_check
      _
    $region3: #{tpu_custom_call.1} parent=1 // pred_check_branch
      %11 = sbr.rel (0) target = $region5
    $region4: #{tpu_custom_call.1} parent=1 // pred_region
      %s12 = sadd.s32 0, 0
      %s13 = smul.u32 2, %s12
      %15 = vsyncadd [#allocation4], 0
      %s16 = smul.addr %s13, 8
      %s17 = scalar_lea.hbm %s0, %s16
      %s18 = sshll.u32 %s17, 4
      %s19 = int_to_ptr.hbm [resolvable:$true] %s18
      %s20 = sshll.u32 [#allocation3], 4
      %s21 = int_to_ptr.vmem [resolvable:$true] %s20
      %26 = dma.hbm_to_vmem [thread:$0]  %s19, 256, %s21, [#allocation4], 128, 128, 8
    $region5: #{tpu_custom_call.1} parent=1 // pred_fallthru
      _
    // Predicated region
    $region6: #{tpu_custom_call.1} parent=1 // pred_check
      _
    $region7: #{tpu_custom_call.1} parent=1 // pred_check_branch
      %28 = sbr.rel (0) target = $region9
    $region8: #{tpu_custom_call.1} parent=1 // pred_region
      %30 = vsyncadd [#allocation7], 0
      %s31 = sshll.u32 %s1, 4
      %s32 = int_to_ptr.hbm [resolvable:$true] %s31
      %s33 = sshll.u32 [#allocation6], 4
      %s34 = int_to_ptr.vmem [resolvable:$true] %s33
      %39 = dma.hbm_to_vmem [thread:$0]  %s32, 3456, %s34, [#allocation7], 1152, 1152, 72
    $region9: #{tpu_custom_call.1} parent=1 // pred_fallthru
      _
    // Predicated region
    $region10: #{tpu_custom_call.1} parent=1 // pred_check
      _
    $region11: #{tpu_custom_call.1} parent=1 // pred_check_branch
      %41 = sbr.rel (0) target = $region13
    $region12: #{tpu_custom_call.1} parent=1 // pred_region
      %43 = dma.done [#allocation4], 256
    $region13: #{tpu_custom_call.1} parent=1 // pred_fallthru
      _
    // Predicated region
    $region14: #{tpu_custom_call.1} parent=1 // pred_check
      _
    $region15: #{tpu_custom_call.1} parent=1 // pred_check_branch
      %45 = sbr.rel (0) target = $region17
    $region16: #{tpu_custom_call.1} parent=1 // pred_region
      %47 = dma.done [#allocation7], 3456
    $region17: #{tpu_custom_call.1} parent=1 // pred_fallthru
      _
    %s48 = sadd.s32 0, 0
    %s49 = smul.u32 2, %s48
    %p50 = scmp.eq.s32.totalorder 0, 0
    // Predicated region
    $region18: #{tpu_custom_call.1} parent=1 // pred_check
      %p51 = pneg %p50
    $region19: #{tpu_custom_call.1} parent=1 // pred_check_branch
      %53 = sbr.rel (%p51) target = $region21
    $region20: #{tpu_custom_call.1} parent=1 // pred_region
      %s54 = scalar_lea.smem [#allocation2], 0
      %55 = sst [smem:[%s54]] 0.0
      %s56 = scalar_lea.smem [#allocation2], 1
      %57 = sst [smem:[%s56]] 0.0
    $region21: #{tpu_custom_call.1} parent=1 // pred_fallthru
      _
    %v58 = vld [vmem:[#allocation3] sm:$0xff]
    %v59 = vld [vmem:[#allocation3 + $0x8] sm:$0xff]
    %v60 = vld [vmem:[#allocation6] sm:$0xff]
    %v61 = vld [vmem:[#allocation6 + $0x8] sm:$0xff]
    %v62 = vld [vmem:[#allocation6 + $0x10] sm:$0xff]
    %v63 = vld [vmem:[#allocation6 + $0x18] sm:$0xff]
    %v64 = vld [vmem:[#allocation6 + $0x20] sm:$0xff]
    %v65 = vld [vmem:[#allocation6 + $0x28] sm:$0xff]
    %v66 = vld [vmem:[#allocation6 + $0x30] sm:$0xff]
    %v67 = vld [vmem:[#allocation6 + $0x38] sm:$0xff]
    %v68 = vld [vmem:[#allocation6 + $0x40] sm:$0xff]
    %v69 = vld [vmem:[#allocation6 + $0x48] sm:$0xff]
    %v70 = vld [vmem:[#allocation6 + $0x50] sm:$0xff]
    %v71 = vld [vmem:[#allocation6 + $0x58] sm:$0xff]
    %v72 = vld [vmem:[#allocation6 + $0x60] sm:$0xff]
    %v73 = vld [vmem:[#allocation6 + $0x68] sm:$0xff]
    %v74 = vld [vmem:[#allocation6 + $0x70] sm:$0xff]
    %v75 = vld [vmem:[#allocation6 + $0x78] sm:$0xff]
    %v76 = vld [vmem:[#allocation6 + $0x80] sm:$0xff]
    %v77 = vld [vmem:[#allocation6 + $0x88] sm:$0xff]
    %v78 = vld [vmem:[#allocation6 + $0x90] sm:$0xff]
    %v79 = vld [vmem:[#allocation6 + $0x98] sm:$0xff]
    %v80 = vld [vmem:[#allocation6 + $0xa0] sm:$0xff]
    %v81 = vld [vmem:[#allocation6 + $0xa8] sm:$0xff]
    %v82 = vld [vmem:[#allocation6 + $0xb0] sm:$0xff]
    %v83 = vld [vmem:[#allocation6 + $0xb8] sm:$0xff]
    %v84 = vld [vmem:[#allocation6 + $0xc0] sm:$0xff]
    %v85 = vld [vmem:[#allocation6 + $0xc8] sm:$0xff]
    %v86 = vld [vmem:[#allocation6 + $0xd0] sm:$0xff]
    %vm87 = vcmask 195584
    %v89 = vsel %vm87, %v58, 0
    %v92 = vsel %vm87, %v59, 0
    %94 = vmatpush.msra.mxu0 0.0
    %95 = vmatpush.msra.mxu0 0.0
    %96 = vmatpush.msra.mxu0 0.0
    %97 = vmatpush.msra.mxu0 0.0
    %98 = vmatpush.msra.mxu0 0.0
    %99 = vmatpush.msra.mxu0 0.0
    %100 = vmatpush.msra.mxu0 0.0
    %101 = vmatpush.msra.mxu0 0.0
    %102 = vmatpush.msra.mxu0 0.0
    %103 = vmatpush.msra.mxu0 0.0
    %104 = vmatpush.msra.mxu0 0.0
    %105 = vmatpush.msra.mxu0 0.0
    %106 = vmatpush.msra.mxu0 0.0
    %107 = vmatpush.msra.mxu0 %v78
    %108 = vmatpush.msra.mxu0 %v69
    %109 = vmatpush.msra.mxu0 %v60
    %110 = vmatmul.f32.gmra.mxu0 %v89
    %v111 = vpop.f32.mrf.mxu0
    %v112 = vadd.f32 0.0, %v111
    %113 = vmatmul.f32.gmra.mxu0 %v92
    %v114 = vpop.f32.mrf.mxu0
    %v115 = vadd.f32 0.0, %v114
    %116 = vdwg.mxu0
    %117 = vmatpush.msra.mxu0 0.0
    %118 = vmatpush.msra.mxu0 0.0
    %119 = vmatpush.msra.mxu0 0.0
    %120 = vmatpush.msra.mxu0 0.0
    %121 = vmatpush.msra.mxu0 0.0
    %122 = vmatpush.msra.mxu0 0.0
    %123 = vmatpush.msra.mxu0 0.0
    %124 = vmatpush.msra.mxu0 0.0
    %125 = vmatpush.msra.mxu0 0.0
    %126 = vmatpush.msra.mxu0 0.0
    %127 = vmatpush.msra.mxu0 0.0
    %128 = vmatpush.msra.mxu0 0.0
    %129 = vmatpush.msra.mxu0 0.0
    %130 = vmatpush.msra.mxu0 %v79
    %131 = vmatpush.msra.mxu0 %v70
    %132 = vmatpush.msra.mxu0 %v61
    %133 = vmatmul.f32.gmra.mxu0 %v89
    %v134 = vpop.f32.mrf.mxu0
    %v135 = vadd.f32 0.0, %v134
    %136 = vmatmul.f32.gmra.mxu0 %v92
    %v137 = vpop.f32.mrf.mxu0
    %v138 = vadd.f32 0.0, %v137
    %139 = vdwg.mxu0
    %140 = vmatpush.msra.mxu0 0.0
    %141 = vmatpush.msra.mxu0 0.0
    %142 = vmatpush.msra.mxu0 0.0
    %143 = vmatpush.msra.mxu0 0.0
    %144 = vmatpush.msra.mxu0 0.0
    %145 = vmatpush.msra.mxu0 0.0
    %146 = vmatpush.msra.mxu0 0.0
    %147 = vmatpush.msra.mxu0 0.0
    %148 = vmatpush.msra.mxu0 0.0
    %149 = vmatpush.msra.mxu0 0.0
    %150 = vmatpush.msra.mxu0 0.0
    %151 = vmatpush.msra.mxu0 0.0
    %152 = vmatpush.msra.mxu0 0.0
    %153 = vmatpush.msra.mxu0 %v80
    %154 = vmatpush.msra.mxu0 %v71
    %155 = vmatpush.msra.mxu0 %v62
    %156 = vmatmul.f32.gmra.mxu0 %v89
    %v157 = vpop.f32.mrf.mxu0
    %v158 = vadd.f32 0.0, %v157
    %159 = vmatmul.f32.gmra.mxu0 %v92
    %v160 = vpop.f32.mrf.mxu0
    %v161 = vadd.f32 0.0, %v160
    %162 = vdwg.mxu0
    %163 = vmatpush.msra.mxu0 0.0
    %164 = vmatpush.msra.mxu0 0.0
    %165 = vmatpush.msra.mxu0 0.0
    %166 = vmatpush.msra.mxu0 0.0
    %167 = vmatpush.msra.mxu0 0.0
    %168 = vmatpush.msra.mxu0 0.0
    %169 = vmatpush.msra.mxu0 0.0
    %170 = vmatpush.msra.mxu0 0.0
    %171 = vmatpush.msra.mxu0 0.0
    %172 = vmatpush.msra.mxu0 0.0
    %173 = vmatpush.msra.mxu0 0.0
    %174 = vmatpush.msra.mxu0 0.0
    %175 = vmatpush.msra.mxu0 0.0
    %176 = vmatpush.msra.mxu0 %v81
    %177 = vmatpush.msra.mxu0 %v72
    %178 = vmatpush.msra.mxu0 %v63
    %179 = vmatmul.f32.gmra.mxu0 %v89
    %v180 = vpop.f32.mrf.mxu0
    %v181 = vadd.f32 0.0, %v180
    %182 = vmatmul.f32.gmra.mxu0 %v92
    %v183 = vpop.f32.mrf.mxu0
    %v184 = vadd.f32 0.0, %v183
    %185 = vdwg.mxu0
    %186 = vmatpush.msra.mxu0 0.0
    %187 = vmatpush.msra.mxu0 0.0
    %188 = vmatpush.msra.mxu0 0.0
    %189 = vmatpush.msra.mxu0 0.0
    %190 = vmatpush.msra.mxu0 0.0
    %191 = vmatpush.msra.mxu0 0.0
    %192 = vmatpush.msra.mxu0 0.0
    %193 = vmatpush.msra.mxu0 0.0
    %194 = vmatpush.msra.mxu0 0.0
    %195 = vmatpush.msra.mxu0 0.0
    %196 = vmatpush.msra.mxu0 0.0
    %197 = vmatpush.msra.mxu0 0.0
    %198 = vmatpush.msra.mxu0 0.0
    %199 = vmatpush.msra.mxu0 %v82
    %200 = vmatpush.msra.mxu0 %v73
    %201 = vmatpush.msra.mxu0 %v64
    %202 = vmatmul.f32.gmra.mxu0 %v89
    %v203 = vpop.f32.mrf.mxu0
    %v204 = vadd.f32 0.0, %v203
    %205 = vmatmul.f32.gmra.mxu0 %v92
    %v206 = vpop.f32.mrf.mxu0
    %v207 = vadd.f32 0.0, %v206
    %208 = vdwg.mxu0
    %209 = vmatpush.msra.mxu0 0.0
    %210 = vmatpush.msra.mxu0 0.0
    %211 = vmatpush.msra.mxu0 0.0
    %212 = vmatpush.msra.mxu0 0.0
    %213 = vmatpush.msra.mxu0 0.0
    %214 = vmatpush.msra.mxu0 0.0
    %215 = vmatpush.msra.mxu0 0.0
    %216 = vmatpush.msra.mxu0 0.0
    %217 = vmatpush.msra.mxu0 0.0
    %218 = vmatpush.msra.mxu0 0.0
    %219 = vmatpush.msra.mxu0 0.0
    %220 = vmatpush.msra.mxu0 0.0
    %221 = vmatpush.msra.mxu0 0.0
    %222 = vmatpush.msra.mxu0 %v83
    %223 = vmatpush.msra.mxu0 %v74
    %224 = vmatpush.msra.mxu0 %v65
    %225 = vmatmul.f32.gmra.mxu0 %v89
    %v226 = vpop.f32.mrf.mxu0
    %v227 = vadd.f32 0.0, %v226
    %228 = vmatmul.f32.gmra.mxu0 %v92
    %v229 = vpop.f32.mrf.mxu0
    %v230 = vadd.f32 0.0, %v229
    %231 = vdwg.mxu0
    %232 = vmatpush.msra.mxu0 0.0
    %233 = vmatpush.msra.mxu0 0.0
    %234 = vmatpush.msra.mxu0 0.0
    %235 = vmatpush.msra.mxu0 0.0
    %236 = vmatpush.msra.mxu0 0.0
    %237 = vmatpush.msra.mxu0 0.0
    %238 = vmatpush.msra.mxu0 0.0
    %239 = vmatpush.msra.mxu0 0.0
    %240 = vmatpush.msra.mxu0 0.0
    %241 = vmatpush.msra.mxu0 0.0
    %242 = vmatpush.msra.mxu0 0.0
    %243 = vmatpush.msra.mxu0 0.0
    %244 = vmatpush.msra.mxu0 0.0
    %245 = vmatpush.msra.mxu0 %v84
    %246 = vmatpush.msra.mxu0 %v75
    %247 = vmatpush.msra.mxu0 %v66
    %248 = vmatmul.f32.gmra.mxu0 %v89
    %v249 = vpop.f32.mrf.mxu0
    %v250 = vadd.f32 0.0, %v249
    %251 = vmatmul.f32.gmra.mxu0 %v92
    %v252 = vpop.f32.mrf.mxu0
    %v253 = vadd.f32 0.0, %v252
    %254 = vdwg.mxu0
    %255 = vmatpush.msra.mxu0 0.0
    %256 = vmatpush.msra.mxu0 0.0
    %257 = vmatpush.msra.mxu0 0.0
    %258 = vmatpush.msra.mxu0 0.0
    %259 = vmatpush.msra.mxu0 0.0
    %260 = vmatpush.msra.mxu0 0.0
    %261 = vmatpush.msra.mxu0 0.0
    %262 = vmatpush.msra.mxu0 0.0
    %263 = vmatpush.msra.mxu0 0.0
    %264 = vmatpush.msra.mxu0 0.0
    %265 = vmatpush.msra.mxu0 0.0
    %266 = vmatpush.msra.mxu0 0.0
    %267 = vmatpush.msra.mxu0 0.0
    %268 = vmatpush.msra.mxu0 %v85
    %269 = vmatpush.msra.mxu0 %v76
    %270 = vmatpush.msra.mxu0 %v67
    %271 = vmatmul.f32.gmra.mxu0 %v89
    %v272 = vpop.f32.mrf.mxu0
    %v273 = vadd.f32 0.0, %v272
    %274 = vmatmul.f32.gmra.mxu0 %v92
    %v275 = vpop.f32.mrf.mxu0
    %v276 = vadd.f32 0.0, %v275
    %277 = vdwg.mxu0
    %278 = vmatpush.msra.mxu0 0.0
    %279 = vmatpush.msra.mxu0 0.0
    %280 = vmatpush.msra.mxu0 0.0
    %281 = vmatpush.msra.mxu0 0.0
    %282 = vmatpush.msra.mxu0 0.0
    %283 = vmatpush.msra.mxu0 0.0
    %284 = vmatpush.msra.mxu0 0.0
    %285 = vmatpush.msra.mxu0 0.0
    %286 = vmatpush.msra.mxu0 0.0
    %287 = vmatpush.msra.mxu0 0.0
    %288 = vmatpush.msra.mxu0 0.0
    %289 = vmatpush.msra.mxu0 0.0
    %290 = vmatpush.msra.mxu0 0.0
    %291 = vmatpush.msra.mxu0 %v86
    %292 = vmatpush.msra.mxu0 %v77
    %293 = vmatpush.msra.mxu0 %v68
    %294 = vmatmul.f32.gmra.mxu0 %v89
    %v295 = vpop.f32.mrf.mxu0
    %v296 = vadd.f32 0.0, %v295
    %297 = vmatmul.f32.gmra.mxu0 %v92
    %v298 = vpop.f32.mrf.mxu0
    %v299 = vadd.f32 0.0, %v298
    %300 = vdwg.mxu0
    %v301 = vmul.f32 %v112, %v112
    %v302 = vmul.f32 %v115, %v115
    %v303 = vmul.f32 %v135, %v135
    %v304 = vmul.f32 %v138, %v138
    %v305 = vadd.f32 %v301, %v303
    %v306 = vadd.f32 %v302, %v304
    %v307 = vmul.f32 %v158, %v158
    %v308 = vmul.f32 %v161, %v161
    %v309 = vadd.f32 %v305, %v307
    %v310 = vadd.f32 %v306, %v308
    %v311 = vrsqrt.pop %v309
    %v312 = vmul.f32 %v311, %v309
    %v313 = vmul.f32 %v312, %v311
    %v314 = vmul.f32 0.5, %v313
    %v315 = vsub.f32 1.5, %v314
    %v316 = vmul.f32 %v311, %v315
    %v317 = vmul.f32 %v309, %v316
    %vm318 = vcmp.eq.f32.partialorder %v309, inf
    %v319 = vsel %vm318, %v309, %v317
    %vm320 = vcmp.eq.f32.partialorder %v309, 0.0
    %v321 = vand.u32 %v309, 2147483648
    %v322 = vsel %vm320, %v321, %v319
    %v323 = vrsqrt.pop %v310
    %v324 = vmul.f32 %v323, %v310
    %v325 = vmul.f32 %v324, %v323
    %v326 = vmul.f32 0.5, %v325
    %v327 = vsub.f32 1.5, %v326
    %v328 = vmul.f32 %v323, %v327
    %v329 = vmul.f32 %v310, %v328
    %vm330 = vcmp.eq.f32.partialorder %v310, inf
    %v331 = vsel %vm330, %v310, %v329
    %vm332 = vcmp.eq.f32.partialorder %v310, 0.0
    %v333 = vand.u32 %v310, 2147483648
    %v334 = vsel %vm332, %v333, %v331
    %335 = vadd.xlane.f32.xlu0 %v322
    %v336 = vpop.xlane.xlu0 %335
    %337 = vadd.xlane.f32.xlu0 %v334
    %v338 = vpop.xlane.xlu0 %337
    %v339 = vmul.f32 %v336, 0.14285715
    %v340 = vmul.f32 %v338, 0.14285715
    %v341 = vsub.f32 %v322, %v339
    %v342 = vsub.f32 %v334, %v340
    %v343 = vlaneseq
    %v344 = vand.u32 %v343, 127
    %vm345 = vcmp.lt.s32.totalorder %v344, 7
    %v346 = vsel %vm345, 1, 0
    %vm347 = vcmp.eq.s32.totalorder %v346, 1
    %v348 = vsel %vm347, %v341, 0.0
    %v349 = vsel %vm347, %v342, 0.0
    %v350 = vmul.f32 %v348, %v348
    %v351 = vmul.f32 %v349, %v349
    %v352 = vadd.f32 %v350, %v351
    %353 = vadd.xlane.f32.xlu0 %v352
    %v354 = vpop.xlane.xlu0 %353
    %v355 = vrot.slane %v354, 4
    %v356 = vadd.f32 %v354, %v355
    %v357 = vrot.slane %v356, 2
    %v358 = vadd.f32 %v356, %v357
    %v359 = vrot.slane %v358, 1
    %v360 = vadd.f32 %v358, %v359
    %s361 = vtos %v360
    %s362 = smul.f32 %s361, 0.16666667
    %v363 = vmul.f32 %v181, %v181
    %v364 = vmul.f32 %v184, %v184
    %v365 = vmul.f32 %v204, %v204
    %v366 = vmul.f32 %v207, %v207
    %v367 = vadd.f32 %v363, %v365
    %v368 = vadd.f32 %v364, %v366
    %v369 = vmul.f32 %v227, %v227
    %v370 = vmul.f32 %v230, %v230
    %v371 = vadd.f32 %v367, %v369
    %v372 = vadd.f32 %v368, %v370
    %v373 = vmul.f32 %v250, %v250
    %v374 = vmul.f32 %v253, %v253
    %v375 = vmul.f32 %v273, %v273
    %v376 = vmul.f32 %v276, %v276
    %v377 = vadd.f32 %v373, %v375
    %v378 = vadd.f32 %v374, %v376
    %v379 = vmul.f32 %v296, %v296
    %v380 = vmul.f32 %v299, %v299
    %v381 = vadd.f32 %v377, %v379
    %v382 = vadd.f32 %v378, %v380
    %v383 = vmul.f32 %v181, %v250
    %v384 = vmul.f32 %v184, %v253
    %v385 = vmul.f32 %v204, %v273
    %v386 = vmul.f32 %v207, %v276
    %v387 = vadd.f32 %v383, %v385
    %v388 = vadd.f32 %v384, %v386
    %v389 = vmul.f32 %v227, %v296
    %v390 = vmul.f32 %v230, %v299
    %v391 = vadd.f32 %v387, %v389
    %v392 = vadd.f32 %v388, %v390
    %v393 = vmul.f32 %v371, %v381
    %v394 = vmul.f32 %v372, %v382
    %v395 = vmax.f32 %v393, 1e-24
    %v396 = vmax.f32 %v394, 1e-24
    %v397 = vrsqrt.pop %v395
    %v398 = vmul.f32 %v397, %v395
    %v399 = vmul.f32 %v398, %v397
    %v400 = vmul.f32 0.5, %v399
    %v401 = vsub.f32 1.5, %v400
    %v402 = vmul.f32 %v397, %v401
    %vm403 = vweird.f32 %v395
    %vm404 = vweird.f32 %v397
    %vm405 = vmor %vm403, %vm404
    %v406 = vsel %vm405, %v397, %v402
    %v407 = vrsqrt.pop %v396
    %v408 = vmul.f32 %v407, %v396
    %v409 = vmul.f32 %v408, %v407
    %v410 = vmul.f32 0.5, %v409
    %v411 = vsub.f32 1.5, %v410
    %v412 = vmul.f32 %v407, %v411
    %vm413 = vweird.f32 %v396
    %vm414 = vweird.f32 %v407
    %vm415 = vmor %vm413, %vm414
    %v416 = vsel %vm415, %v407, %v412
    %v417 = vmul.f32 %v391, %v406
    %v418 = vmul.f32 %v392, %v416
    %v419 = vmax.f32 %v417, -1.0
    %v420 = vmax.f32 %v418, -1.0
    %v421 = vmin.f32 %v419, 1.0
    %v422 = vmin.f32 %v420, 1.0
    %423 = vadd.xlane.f32.xlu0 %v421
    %v424 = vpop.xlane.xlu0 %423
    %425 = vadd.xlane.f32.xlu0 %v422
    %v426 = vpop.xlane.xlu0 %425
    %v427 = vmul.f32 %v424, 0.16666667
    %v428 = vmul.f32 %v426, 0.16666667
    %v429 = vsub.f32 %v421, %v427
    %v430 = vsub.f32 %v422, %v428
    %vm431 = vcmp.lt.s32.totalorder %v344, 6
    %v432 = vsel %vm431, 1, 0
    %vm433 = vcmp.eq.s32.totalorder %v432, 1
    %v434 = vsel %vm433, %v429, 0.0
    %v435 = vsel %vm433, %v430, 0.0
    %v436 = vmul.f32 %v434, %v434
    %v437 = vmul.f32 %v435, %v435
    %v438 = vadd.f32 %v436, %v437
    %439 = vadd.xlane.f32.xlu0 %v438
    %v440 = vpop.xlane.xlu0 %439
    %v441 = vrot.slane %v440, 4
    %v442 = vadd.f32 %v440, %v441
    %v443 = vrot.slane %v442, 2
    %v444 = vadd.f32 %v442, %v443
    %v445 = vrot.slane %v444, 1
    %v446 = vadd.f32 %v444, %v445
    %s447 = vtos %v446
    %s448 = smul.f32 %s447, 0.2
    %s449 = sld [smem:[#allocation2]]
    %s450 = sadd.f32 %s449, %s362
    %s451 = scalar_lea.smem [#allocation2], 0
    %452 = sst [smem:[%s451]] %s450
    %s453 = sld [smem:[#allocation2 + $0x1]]
    %s454 = sadd.f32 %s453, %s448
    %s455 = scalar_lea.smem [#allocation2], 1
    %456 = sst [smem:[%s455]] %s454
    // Predicated region
    $region22: #{tpu_custom_call.1} parent=1 // pred_check
      %p457 = pneg %p50
    $region23: #{tpu_custom_call.1} parent=1 // pred_check_branch
      %459 = sbr.rel (%p457) target = $region25
    $region24: #{tpu_custom_call.1} parent=1 // pred_region
      %v460 = vlaneseq
      %v461 = vshrl.u32 %v460, 7
      %vm462 = vcmp.eq.s32.totalorder %v461, 0
      %vm463 = vcmp.eq.s32.totalorder %v344, 0
      %vm464 = vmand %vm462, %vm463
      %s465 = sld [smem:[#allocation2]]
      %vm466 = vcmp.eq.s32.totalorder %v344, 1
      %vm467 = vmand %vm462, %vm466
      %s468 = sld [smem:[#allocation2 + $0x1]]
      %v469 = vstv %s468
      %v470 = vsel %vm467, %v469, 0.0
      %v471 = vstv %s465
      %v472 = vsel %vm464, %v471, %v470
      %473 = vst [vmem:[#allocation8] sm:$0xff] %v472
    $region25: #{tpu_custom_call.1} parent=1 // pred_fallthru
      _
    // Predicated region
    $region26: #{tpu_custom_call.1} parent=1 // pred_check
      _
    $region27: #{tpu_custom_call.1} parent=1 // pred_check_branch
      %475 = sbr.rel (0) target = $region29
    $region28: #{tpu_custom_call.1} parent=1 // pred_region
      %477 = vsyncadd [#allocation5], 0
      %s479 = sshll.u32 [#allocation8], 4
      %s480 = int_to_ptr.vmem [resolvable:$true] %s479
      %s481 = sshll.u32 %s2, 4
      %s482 = int_to_ptr.hbm [resolvable:$true] %s481
      %484 = dma.vmem_to_hbm [thread:$0]  %s480, 128, %s482, [#allocation5]
    $region29: #{tpu_custom_call.1} parent=1 // pred_fallthru
      _
    // Predicated region
    $region30: #{tpu_custom_call.1} parent=1 // pred_check
      _
    $region31: #{tpu_custom_call.1} parent=1 // pred_check_branch
      %486 = sbr.rel (0) target = $region33
    $region32: #{tpu_custom_call.1} parent=1 // pred_region
      %488 = dma.done [#allocation5], 128
    $region33: #{tpu_custom_call.1} parent=1 // pred_fallthru
      _
    %489 = vsyncpa [#allocation4], 1
    %490 = vsyncpa [#allocation7], 1
    %491 = vsyncpa [#allocation5], 1

</llo_original>
